<compile_context>
chip_gen: v5e
topology: v5e:2x2
jax: 0.10.0
libtpu: 0.0.40
codegen_flags: <defaults>
</compile_context>

<pallas_src>
import functools

import jax
import jax.numpy as jnp
from jax.experimental import pallas as pl
from jax.experimental.pallas import tpu as pltpu


def _pa_kernel(x_ref, w1_ref, b1_ref, w2_ref, b2_ref, o_ref, *, k):
    # x_ref / o_ref: (K, C, THW)  K packed images, channels in sublanes, pixels in lanes
    # w1_ref: (Cr, C)   conv1 1x1 weight (torch layout, squeezed)
    # b1_ref: (Cr, 1)   conv1 bias (column; broadcasts over lanes)
    # w2_ref: (Cr, 1)   conv2 1x1 weight (column)
    # b2_ref: (1, 1)    conv2 bias (SMEM scalar)
    w1 = w1_ref[...]
    b1 = b1_ref[...]
    w2 = w2_ref[...]
    b2 = b2_ref[0, 0]

    # Short, statically unrolled loop over the packed images (k <= 8).
    for i in range(k):
        # conv1 + ReLU on the MXU: (Cr, C) @ (C, THW) -> lane-dense (Cr, THW).
        h = jnp.dot(w1, x_ref[i], preferred_element_type=jnp.float32)
        h = jnp.maximum(h + b1, 0.0)
        # conv2: length-Cr contraction on the VPU/XLU (too tiny for the MXU).
        a = jnp.sum(h * w2, axis=0, keepdims=True) + b2            # (1, THW)
        y = jax.nn.sigmoid(a)                                       # exp on the EUP
        # Pixel attention: per-pixel scalar broadcast over channels.
        # Re-read x_ref (cheap vld) instead of holding the whole tile live.
        o_ref[i] = (x_ref[i] * y).astype(o_ref.dtype)


def _choose_tiling(n, c, hw, itemsize, target_block_bytes, max_batch_pack=8):
    """Pick (k, thw): images packed per block and lane (pixel) tile width."""
    # Widest lane tile (multiple of 128) keeping the x block near the target.
    max_thw = max(128, (target_block_bytes // (c * itemsize)) // 128 * 128)
    if hw > max_thw:
        # Large feature map: tile the pixel axis; the last tile may be ragged
        # (Pallas masks its stores; pad lanes are pixel-local garbage only).
        return 1, max_thw
    # Small feature map: one full-extent pixel tile; pack images per step.
    thw = hw
    per_image = c * thw * itemsize
    k = int(max(1, min(target_block_bytes // per_image, max_batch_pack, n)))
    if n >= 2:
        # Keep >= 2 grid steps along the "parallel" batch axis (v7x megacore).
        k = min(k, max(1, n // 2))
    while n % k:              # largest divisor of n not exceeding the cap
        k -= 1
    return k, thw


@functools.partial(jax.jit, static_argnames=("target_block_bytes",))
def pa_layer(x_nchw, w1, b1, w2, b2, *, target_block_bytes=2 * 1024 * 1024):
    """Pixel attention (PALayer.forward).

    x_nchw: (N, C, H, W)
    w1: (Cr, C)  conv1 weight (torch (Cr, C, 1, 1) squeezed), b1: (Cr,)
    w2: (1, Cr)  conv2 weight (torch (1, Cr, 1, 1) squeezed), b2: (1,)
    """
    n, c, h, w = x_nchw.shape
    cr = w1.shape[0]
    hw = h * w
    assert cr >= 1, "PALayer needs channel // 8 >= 1"

    k, thw = _choose_tiling(n, c, hw, x_nchw.dtype.itemsize, target_block_bytes)
    grid = (n // k, pl.cdiv(hw, thw))

    x3 = x_nchw.reshape(n, c, hw)             # free reshape, NCHW is contiguous
    b1_col = b1.reshape(cr, 1)
    w2_col = w2.reshape(cr, 1)
    b2_smem = b2.reshape(1, 1).astype(jnp.float32)

    out3 = pl.pallas_call(
        functools.partial(_pa_kernel, k=k),
        out_shape=jax.ShapeDtypeStruct((n, c, hw), x_nchw.dtype),
        grid_spec=pltpu.PrefetchScalarGridSpec(
            num_scalar_prefetch=0,
            grid=grid,
            in_specs=[
                pl.BlockSpec((k, c, thw), lambda b, t: (b, 0, t)),   # x tile
                pl.BlockSpec((cr, c), lambda b, t: (0, 0)),          # w1 (resident)
                pl.BlockSpec((cr, 1), lambda b, t: (0, 0)),          # b1
                pl.BlockSpec((cr, 1), lambda b, t: (0, 0)),          # w2
                pl.BlockSpec(memory_space=pltpu.MemorySpace.SMEM),   # b2 scalar
            ],
            out_specs=pl.BlockSpec((k, c, thw), lambda b, t: (b, 0, t)),
        ),
        compiler_params=pltpu.CompilerParams(
            dimension_semantics=("parallel", "parallel"),
        ),
    )(x3, w1, b1_col, w2_col, b2_smem)

    return out3.reshape(n, c, h, w)


def _init_params(key, channel):
    """Deterministic init matching PyTorch Conv2d defaults (uniform +-1/sqrt(fan_in))."""
    cr = channel // 8
    k1, k2, k3, k4 = jax.random.split(key, 4)
    bound1 = 1.0 / jnp.sqrt(channel)       # fan_in of conv1 = channel * 1 * 1
    bound2 = 1.0 / jnp.sqrt(cr)            # fan_in of conv2 = cr * 1 * 1
    w1 = jax.random.uniform(k1, (cr, channel), jnp.float32, -bound1, bound1)
    b1 = jax.random.uniform(k2, (cr,), jnp.float32, -bound1, bound1)
    w2 = jax.random.uniform(k3, (1, cr), jnp.float32, -bound2, bound2)
    b2 = jax.random.uniform(k4, (1,), jnp.float32, -bound2, bound2)
    return w1, b1, w2, b2


def _reference(x_nchw, w1, b1, w2, b2):
    """Pure-JAX reference of PALayer.forward (NCHW semantics)."""
    n, c, h, w = x_nchw.shape
    x_flat = jnp.transpose(x_nchw, (0, 2, 3, 1)).reshape(-1, c)            # (P, C)
    hidden = jnp.maximum(x_flat @ w1.T + b1, 0.0)                           # (P, Cr)
    att = jax.nn.sigmoid(
        jnp.sum(hidden * w2.reshape(1, -1), axis=-1, keepdims=True) + b2)   # (P, 1)
    out = x_flat * att
    return jnp.transpose(out.reshape(n, h, w, c), (0, 3, 1, 2))


if __name__ == "__main__":
    def _run_case(n, c, h, w, case_key, **kw):
        kx, kp = jax.random.split(case_key)
        x = jax.random.normal(kx, (n, c, h, w), dtype=jnp.float32)
        w1, b1, w2, b2 = _init_params(kp, c)
        out = jax.block_until_ready(pa_layer(x, w1, b1, w2, b2, **kw))
        ref = _reference(x, w1, b1, w2, b2)
        assert out.shape == x.shape and out.dtype == x.dtype
        assert jnp.allclose(out, ref, atol=2e-5, rtol=2e-5), (
            f"mismatch vs reference for shape {(n, c, h, w)}")

    k0, k1, k2 = jax.random.split(jax.random.PRNGKey(0), 3)
    # Dense small case (lane-dense 256-pixel rows, 2 parallel grid steps).
    _run_case(2, 32, 16, 16, k0)
    # Ragged H*W (143 pixels, full-extent lane block) + batch packing (k=2).
    _run_case(4, 16, 13, 11, k1)
    # Multiple pixel tiles with a ragged last tile (tiny tile budget forces it).
    _run_case(1, 8, 40, 40, k2, target_block_bytes=32 * 1024)

    print("KERNEL_OK")
</pallas_src>

<mosaic_0001>
module attributes {stable_mosaic.version = 11 : i64} {
  func.func @_pa_kernel(%arg0: i32, %arg1: i32, %arg2: memref<1x32x256xf32, #tpu.memory_space<vmem>>, %arg3: memref<4x32xf32, #tpu.memory_space<vmem>>, %arg4: memref<4x1xf32, #tpu.memory_space<vmem>>, %arg5: memref<4x1xf32, #tpu.memory_space<vmem>>, %arg6: memref<1x1xf32, #tpu.memory_space<smem>>, %arg7: memref<1x32x256xf32, #tpu.memory_space<vmem>>) attributes {dimension_semantics = [#tpu.dimension_semantics<parallel>, #tpu.dimension_semantics<parallel>], iteration_bounds = array<i64: 2, 1>, scalar_prefetch = 0 : i64, scratch_operands = 0 : i64, tpu.core_type = #tpu.core_type<tc>, window_params = [{transform_indices = @transform_0, window_bounds = array<i64: 1, 32, 256>}, {pipeline_mode = #tpu.pipeline_mode<synchronous>, transform_indices = @transform_1, window_bounds = array<i64: 4, 32>}, {pipeline_mode = #tpu.pipeline_mode<synchronous>, transform_indices = @transform_2, window_bounds = array<i64: 4, 1>}, {pipeline_mode = #tpu.pipeline_mode<synchronous>, transform_indices = @transform_3, window_bounds = array<i64: 4, 1>}, {transform_indices = @transform_4, window_bounds = array<i64: 1, 1>}, {transform_indices = @transform_5, window_bounds = array<i64: 1, 32, 256>}]} {
    %c0 = arith.constant 0 : index
    %c0_0 = arith.constant 0 : index
    %0 = vector.load %arg3[%c0, %c0_0] : memref<4x32xf32, #tpu.memory_space<vmem>>, vector<4x32xf32>
    %c0_1 = arith.constant 0 : index
    %c0_2 = arith.constant 0 : index
    %1 = vector.load %arg4[%c0_1, %c0_2] : memref<4x1xf32, #tpu.memory_space<vmem>>, vector<4x1xf32>
    %c0_3 = arith.constant 0 : index
    %c0_4 = arith.constant 0 : index
    %2 = vector.load %arg5[%c0_3, %c0_4] : memref<4x1xf32, #tpu.memory_space<vmem>>, vector<4x1xf32>
    %c0_5 = arith.constant 0 : index
    %c0_6 = arith.constant 0 : index
    %3 = memref.load %arg6[%c0_5, %c0_6] : memref<1x1xf32, #tpu.memory_space<smem>>
    %c0_7 = arith.constant 0 : index
    %c0_8 = arith.constant 0 : index
    %c0_9 = arith.constant 0 : index
    %4 = vector.load %arg2[%c0_7, %c0_8, %c0_9] : memref<1x32x256xf32, #tpu.memory_space<vmem>>, vector<1x32x256xf32>
    %5 = vector.shape_cast %4 : vector<1x32x256xf32> to vector<32x256xf32>
    %cst = arith.constant dense<0.000000e+00> : vector<4x256xf32>
    %6 = tpu.matmul %0, %5, %cst {dimension_numbers = #tpu.dot_dimension_numbers<[1], [0], [0], [1], [0, 0, 1, 1], [], []>} : vector<4x32xf32>, vector<32x256xf32>, vector<4x256xf32> -> vector<4x256xf32>
    %7 = vector.broadcast %1 : vector<4x1xf32> to vector<4x256xf32>
    %8 = arith.addf %6, %7 : vector<4x256xf32>
    %cst_10 = arith.constant 0.000000e+00 : f32
    %9 = vector.broadcast %cst_10 : f32 to vector<4x256xf32>
    %10 = arith.maximumf %8, %9 : vector<4x256xf32>
    %11 = vector.broadcast %2 : vector<4x1xf32> to vector<4x256xf32>
    %12 = arith.mulf %10, %11 : vector<4x256xf32>
    %cst_11 = arith.constant dense<0.000000e+00> : vector<256xf32>
    %13 = vector.multi_reduction <add>, %12, %cst_11 [0] : vector<4x256xf32> to vector<256xf32>
    %14 = vector.shape_cast %13 : vector<256xf32> to vector<1x256xf32>
    %15 = vector.broadcast %3 : f32 to vector<1x256xf32>
    %16 = arith.addf %14, %15 : vector<1x256xf32>
    %17 = arith.negf %16 : vector<1x256xf32>
    %18 = math.exp %17 : vector<1x256xf32>
    %cst_12 = arith.constant 1.000000e+00 : f32
    %19 = vector.broadcast %cst_12 : f32 to vector<1x256xf32>
    %20 = arith.addf %19, %18 : vector<1x256xf32>
    %21 = arith.divf %19, %20 : vector<1x256xf32>
    %c0_13 = arith.constant 0 : index
    %c0_14 = arith.constant 0 : index
    %c0_15 = arith.constant 0 : index
    %22 = vector.load %arg2[%c0_13, %c0_14, %c0_15] : memref<1x32x256xf32, #tpu.memory_space<vmem>>, vector<1x32x256xf32>
    %23 = vector.shape_cast %22 : vector<1x32x256xf32> to vector<32x256xf32>
    %24 = vector.broadcast %21 : vector<1x256xf32> to vector<32x256xf32>
    %25 = arith.mulf %23, %24 : vector<32x256xf32>
    %c0_16 = arith.constant 0 : index
    %c0_17 = arith.constant 0 : index
    %c0_18 = arith.constant 0 : index
    %26 = vector.load %arg7[%c0_16, %c0_17, %c0_18] : memref<1x32x256xf32, #tpu.memory_space<vmem>>, vector<1x32x256xf32>
    %27 = vector.shape_cast %26 : vector<1x32x256xf32> to vector<32x256xf32>
    %28 = vector.shape_cast %25 : vector<32x256xf32> to vector<1x32x256xf32>
    tpu.vector_store %arg7[%c0_16, %c0_17, %c0_18], %28 {strides = array<i32>} : memref<1x32x256xf32, #tpu.memory_space<vmem>>, vector<1x32x256xf32>,
    return
  }
  func.func @transform_0(%arg0: i32, %arg1: i32) -> (i32, i32, i32) {
    %c0_i32 = arith.constant 0 : i32
    %c0_i32_0 = arith.constant 0 : i32
    return %arg0, %c0_i32, %arg1 : i32, i32, i32
  }
  func.func @transform_1(%arg0: i32, %arg1: i32) -> (i32, i32) {
    %c0_i32 = arith.constant 0 : i32
    %c0_i32_0 = arith.constant 0 : i32
    %c0_i32_1 = arith.constant 0 : i32
    return %c0_i32, %c0_i32_0 : i32, i32
  }
  func.func @transform_2(%arg0: i32, %arg1: i32) -> (i32, i32) {
    %c0_i32 = arith.constant 0 : i32
    %c0_i32_0 = arith.constant 0 : i32
    %c0_i32_1 = arith.constant 0 : i32
    return %c0_i32, %c0_i32_0 : i32, i32
  }
  func.func @transform_3(%arg0: i32, %arg1: i32) -> (i32, i32) {
    %c0_i32 = arith.constant 0 : i32
    %c0_i32_0 = arith.constant 0 : i32
    %c0_i32_1 = arith.constant 0 : i32
    return %c0_i32, %c0_i32_0 : i32, i32
  }
  func.func @transform_4(%arg0: i32, %arg1: i32) -> (i32, i32) {
    %c0_i32 = arith.constant 0 : i32
    %c0_i32_0 = arith.constant 0 : i32
    %c0_i32_1 = arith.constant 0 : i32
    return %c0_i32, %c0_i32_0 : i32, i32
  }
  func.func @transform_5(%arg0: i32, %arg1: i32) -> (i32, i32, i32) {
    %c0_i32 = arith.constant 0 : i32
    %c0_i32_0 = arith.constant 0 : i32
    return %arg0, %c0_i32, %arg1 : i32, i32, i32
  }
}

</mosaic_0001>

<llo_original>
// kernel: pa_layer.1
$region0: #{pa_layer.1}
  #allocation0 [shape = 'u32[]', space=smem, size = 0x4, offset = 0x4, fixed_abs, tag = 'smem constant byte address 0x4 - core index']
  #allocation1 [shape = 'u32[72,128]{1,0:T(1,128)}', space=vmem, size = 0x9000, scoped, tag = 'internal scratch']
  #allocation2 [shape = 'f32[1,1]{1,0:T(1,128)S(6)}', space=smem, size = 0x200, scoped, tag = 'scoped memory for pa_layer.1']
  %s0 = inlined_call_operand.vmem [shape: f32[2,32,256], index: 0, kind: input, shape index: {}]
  %s1 = inlined_call_operand.vmem [shape: f32[4,32], index: 1, kind: input, shape index: {}]
  %s2 = inlined_call_operand.vmem [shape: f32[4,1], index: 2, kind: input, shape index: {}]
  %s3 = inlined_call_operand.vmem [shape: f32[4,1], index: 3, kind: input, shape index: {}]
  %s4 = inlined_call_operand.<no memory space> [shape: f32[1,1], index: 4, kind: input, shape index: {}]
  %s5 = inlined_call_operand.vmem [shape: f32[2,32,256], index: 5, kind: output, shape index: {}]
  %s6 = sld [smem:[#allocation0]]
  $region53: #{pa_layer.1} parent=0
    _
  %s8 = ssub.s32 1, %s6
  %s9 = scalar_select 0, %s8, %s6
  %10 = sst [smem:[#allocation2]] %s4
  loop: start=0, step=1, limit=4
  $region2: #{pa_layer.1} parent=0 // loop_pre_header
    _
  $region3: #{pa_layer.1} parent=0 // loop_header
    %s12 = sphi 0, %s16
    %p13 = scmp.ge.s32.totalorder %s12, 4
    %s19 = sphi 0, %s31
    %s20 = sphi 0, %s27
    %s21 = sphi 0, %s19
    %s22 = sphi 0, %s20
    %s23 = sphi 0, %s21
    %s24 = sphi 0, %s22
    %s36 = sphi 0, %s38
    %s39 = sphi 0, %s36
    %s40 = sphi 0, %s39
    %s56 = sphi 0, %s40
    %s60 = sphi 0, %s60
    %s62 = sphi 0, %s60
    %s63 = sphi 0, %s62
    %s77 = sphi 0, %s63
    %s81 = sphi 0, %s81
    %s83 = sphi 0, %s81
    %s84 = sphi 0, %s83
    %s98 = sphi 0, %s84
    %s102 = sphi 0, %s102
    %s104 = sphi 0, %s102
    %s105 = sphi 0, %s104
    %s119 = sphi 0, %s105
    %s123 = sphi 0, %s123
    %s125 = sphi 0, %s123
    %s126 = sphi 0, %s125
    %s140 = sphi 0, %s126
    %s148 = sphi 0, %s150
    %s151 = sphi 0, %s148
    %s152 = sphi 0, %s151
    %s168 = sphi 0, %s152
  $region4: #{pa_layer.1} parent=0 // loop_header_branch
    %15 = sbr.rel (%p13) target = $region8
  $region5: #{pa_layer.1} parent=0 // loop_body
    %s17 = ssub.s32 %s12, 1
    %s18 = ssub.s32 %s12, 2
    %s25 = sadd.s32 1, %s20
    %p26 = scmp.ge.s32.totalorder %s25, 1
    %s27 = scalar_select %p26, 0, %s25
    %s28 = sadd.s32 1, %s19
    %s29 = scalar_select %p26, %s28, %s19
    %p30 = scmp.ge.s32.totalorder %s29, 2
    %s31 = scalar_select %p30, 0, %s29
    %s32 = ssub.s32 %s19, %s31
    %s33 = ssub.s32 %s20, %s27
    %s34 = sor.u32 %s32, %s33
    %p35 = scmp.eq.s32.totalorder %s34, 0
    %s37 = sadd.s32 %s36, 1
    %s38 = scalar_select %p35, %s36, %s37
    %p41 = pneg %p35
    %p42 = scmp.eq.s32.totalorder %s12, 1
    %p43 = por %p41, %p42
    %p44 = scmp.ne.s32.totalorder %s36, %s39
    %p45 = scmp.eq.s32.totalorder %s12, 0
    %p46 = por %p44, %p45
    %p47 = scmp.ne.s32.totalorder %s36, %s39
    %p48 = scmp.eq.s32.totalorder %s17, 1
    %p49 = por %p47, %p48
    %p50 = scmp.ne.s32.totalorder %s39, %s40
    %p51 = scmp.eq.s32.totalorder %s17, 0
    %p52 = por %p50, %p51
    %p53 = scmp.ne.s32.totalorder %s39, %s40
    %p54 = scmp.eq.s32.totalorder %s18, 1
    %p55 = por %p53, %p54
    %p57 = scmp.ne.s32.totalorder %s40, %s56
    %p58 = scmp.eq.s32.totalorder %s18, 0
    %p59 = por %p57, %p58
    %s61 = sadd.s32 %s60, 1
    %p64 = scmp.eq.s32.totalorder %s12, 1
    %p65 = scmp.ne.s32.totalorder %s60, %s62
    %p66 = scmp.eq.s32.totalorder %s12, 0
    %p67 = por %p65, %p66
    %p68 = scmp.ne.s32.totalorder %s60, %s62
    %p69 = scmp.eq.s32.totalorder %s17, 1
    %p70 = por %p68, %p69
    %p71 = scmp.ne.s32.totalorder %s62, %s63
    %p72 = scmp.eq.s32.totalorder %s17, 0
    %p73 = por %p71, %p72
    %p74 = scmp.ne.s32.totalorder %s62, %s63
    %p75 = scmp.eq.s32.totalorder %s18, 1
    %p76 = por %p74, %p75
    %p78 = scmp.ne.s32.totalorder %s63, %s77
    %p79 = scmp.eq.s32.totalorder %s18, 0
    %p80 = por %p78, %p79
    %s82 = sadd.s32 %s81, 1
    %p85 = scmp.eq.s32.totalorder %s12, 1
    %p86 = scmp.ne.s32.totalorder %s81, %s83
    %p87 = scmp.eq.s32.totalorder %s12, 0
    %p88 = por %p86, %p87
    %p89 = scmp.ne.s32.totalorder %s81, %s83
    %p90 = scmp.eq.s32.totalorder %s17, 1
    %p91 = por %p89, %p90
    %p92 = scmp.ne.s32.totalorder %s83, %s84
    %p93 = scmp.eq.s32.totalorder %s17, 0
    %p94 = por %p92, %p93
    %p95 = scmp.ne.s32.totalorder %s83, %s84
    %p96 = scmp.eq.s32.totalorder %s18, 1
    %p97 = por %p95, %p96
    %p99 = scmp.ne.s32.totalorder %s84, %s98
    %p100 = scmp.eq.s32.totalorder %s18, 0
    %p101 = por %p99, %p100
    %s103 = sadd.s32 %s102, 1
    %p106 = scmp.eq.s32.totalorder %s12, 1
    %p107 = scmp.ne.s32.totalorder %s102, %s104
    %p108 = scmp.eq.s32.totalorder %s12, 0
    %p109 = por %p107, %p108
    %p110 = scmp.ne.s32.totalorder %s102, %s104
    %p111 = scmp.eq.s32.totalorder %s17, 1
    %p112 = por %p110, %p111
    %p113 = scmp.ne.s32.totalorder %s104, %s105
    %p114 = scmp.eq.s32.totalorder %s17, 0
    %p115 = por %p113, %p114
    %p116 = scmp.ne.s32.totalorder %s104, %s105
    %p117 = scmp.eq.s32.totalorder %s18, 1
    %p118 = por %p116, %p117
    %p120 = scmp.ne.s32.totalorder %s105, %s119
    %p121 = scmp.eq.s32.totalorder %s18, 0
    %p122 = por %p120, %p121
    %s124 = sadd.s32 %s123, 1
    %p127 = scmp.eq.s32.totalorder %s12, 1
    %p128 = scmp.ne.s32.totalorder %s123, %s125
    %p129 = scmp.eq.s32.totalorder %s12, 0
    %p130 = por %p128, %p129
    %p131 = scmp.ne.s32.totalorder %s123, %s125
    %p132 = scmp.eq.s32.totalorder %s17, 1
    %p133 = por %p131, %p132
    %p134 = scmp.ne.s32.totalorder %s125, %s126
    %p135 = scmp.eq.s32.totalorder %s17, 0
    %p136 = por %p134, %p135
    %p137 = scmp.ne.s32.totalorder %s125, %s126
    %p138 = scmp.eq.s32.totalorder %s18, 1
    %p139 = por %p137, %p138
    %p141 = scmp.ne.s32.totalorder %s126, %s140
    %p142 = scmp.eq.s32.totalorder %s18, 0
    %p143 = por %p141, %p142
    %s144 = ssub.s32 %s19, %s31
    %s145 = ssub.s32 %s20, %s27
    %s146 = sor.u32 %s144, %s145
    %p147 = scmp.eq.s32.totalorder %s146, 0
    %s149 = sadd.s32 %s148, 1
    %s150 = scalar_select %p147, %s148, %s149
    %p153 = pneg %p147
    %p154 = scmp.eq.s32.totalorder %s12, 1
    %p155 = por %p153, %p154
    %p156 = scmp.ne.s32.totalorder %s148, %s151
    %p157 = scmp.eq.s32.totalorder %s12, 0
    %p158 = por %p156, %p157
    %p159 = scmp.ne.s32.totalorder %s148, %s151
    %p160 = scmp.eq.s32.totalorder %s17, 1
    %p161 = por %p159, %p160
    %p162 = scmp.ne.s32.totalorder %s151, %s152
    %p163 = scmp.eq.s32.totalorder %s17, 0
    %p164 = por %p162, %p163
    %p165 = scmp.ne.s32.totalorder %s151, %s152
    %p166 = scmp.eq.s32.totalorder %s18, 1
    %p167 = por %p165, %p166
    %p169 = scmp.ne.s32.totalorder %s152, %s168
    %p170 = scmp.eq.s32.totalorder %s18, 0
    %p171 = por %p169, %p170
    %p172 = scmp.le.s32.totalorder 1, %s12
    %p173 = scmp.lt.s32.totalorder %s12, 3
    %p174 = pnand %p172, %p173
    %p175 = pneg %p174
    // Predicated region
    $region9: #{pa_layer.1} parent=5 // pred_check
      _
    $region10: #{pa_layer.1} parent=5 // pred_check_branch
      %177 = sbr.rel (%p174) target = $region12
    $region11: #{pa_layer.1} parent=5 // pred_region
      %s178 = ssub.s32 %s12, 1
      // Predicated region
      $region13: #{pa_layer.1} parent=11 // pred_check
        %p179 = pneg %p73
      $region14: #{pa_layer.1} parent=11 // pred_check_branch
        %181 = sbr.rel (%p179) target = $region16
      $region15: #{pa_layer.1} parent=11 // pred_region
        _
      $region16: #{pa_layer.1} parent=11 // pred_fallthru
        _
      // Predicated region
      $region17: #{pa_layer.1} parent=11 // pred_check
        %p182 = pneg %p94
      $region18: #{pa_layer.1} parent=11 // pred_check_branch
        %184 = sbr.rel (%p182) target = $region20
      $region19: #{pa_layer.1} parent=11 // pred_region
        _
      $region20: #{pa_layer.1} parent=11 // pred_fallthru
        _
      // Predicated region
      $region21: #{pa_layer.1} parent=11 // pred_check
        %p185 = pneg %p115
      $region22: #{pa_layer.1} parent=11 // pred_check_branch
        %187 = sbr.rel (%p185) target = $region24
      $region23: #{pa_layer.1} parent=11 // pred_region
        _
      $region24: #{pa_layer.1} parent=11 // pred_fallthru
        _
      // Predicated region
      $region25: #{pa_layer.1} parent=11 // pred_check
        %p188 = pneg %p136
      $region26: #{pa_layer.1} parent=11 // pred_check_branch
        %190 = sbr.rel (%p188) target = $region28
      $region27: #{pa_layer.1} parent=11 // pred_region
        _
      $region28: #{pa_layer.1} parent=11 // pred_fallthru
        _
    $region12: #{pa_layer.1} parent=5 // pred_fallthru
      _
    %p191 = scmp.lt.s32.totalorder %s12, 2
    // Predicated region
    $region29: #{pa_layer.1} parent=5 // pred_check
      %p192 = pneg %p191
    $region30: #{pa_layer.1} parent=5 // pred_check_branch
      %194 = sbr.rel (%p192) target = $region32
    $region31: #{pa_layer.1} parent=5 // pred_region
      // Predicated region
      $region33: #{pa_layer.1} parent=31 // pred_check
        %p195 = pneg %p46
      $region34: #{pa_layer.1} parent=31 // pred_check_branch
        %197 = sbr.rel (%p195) target = $region36
      $region35: #{pa_layer.1} parent=31 // pred_region
        %s198 = smul.u32 2, %s20
        %p199 = scmp.lt.s32.totalorder %s19, 1
        %s200 = scalar_select %p199, %s19, 1
        %p201 = scmp.lt.s32.totalorder %s198, 1
        %s202 = scalar_select %p201, %s198, 1
        %s203 = smul.addr %s200, 8
        %s204 = sadd.s32 %s202, %s203
        %s205 = smul.addr %s204, 8
        %s206 = scalar_lea.vmem %s0, %s205
        %s207 = smul.u32 2, %s20
      $region36: #{pa_layer.1} parent=31 // pred_fallthru
        _
    $region32: #{pa_layer.1} parent=5 // pred_fallthru
      _
    %p208 = scmp.le.s32.totalorder 1, %s12
    %p209 = scmp.lt.s32.totalorder %s12, 3
    %p210 = pnand %p208, %p209
    %p211 = pneg %p210
    // Predicated region
    $region37: #{pa_layer.1} parent=5 // pred_check
      _
    $region38: #{pa_layer.1} parent=5 // pred_check_branch
      %213 = sbr.rel (%p210) target = $region40
    $region39: #{pa_layer.1} parent=5 // pred_region
      %s214 = ssub.s32 %s12, 1
      %s215 = smul.u32 2, %s22
      %p216 = scmp.lt.s32.totalorder %s21, 1
      %s217 = scalar_select %p216, %s21, 1
      %p218 = scmp.lt.s32.totalorder %s215, 1
      %s219 = scalar_select %p218, %s215, 1
      %s220 = smul.addr %s217, 8
      %s221 = sadd.s32 %s219, %s220
      %s222 = smul.addr %s221, 8
      %s223 = scalar_lea.vmem %s0, %s222
      %p224 = pneg %p52
      %p225 = pneg %p49
      %p226 = pneg %p73
      %p227 = pneg %p70
      %p228 = pneg %p94
      %p229 = pneg %p91
      %p230 = pneg %p115
      %p231 = pneg %p112
      %p232 = pneg %p136
      %p233 = pneg %p133
      %p234 = pneg %p164
      %p235 = pneg %p161
      %s236 = smul.u32 2, %s22
      %p237 = scmp.lt.s32.totalorder %s21, 1
      %s238 = scalar_select %p237, %s21, 1
      %p239 = scmp.lt.s32.totalorder %s236, 1
      %s240 = scalar_select %p239, %s236, 1
      %s241 = smul.addr %s238, 8
      %s242 = sadd.s32 %s240, %s241
      %s243 = smul.addr %s242, 8
      %s244 = scalar_lea.vmem %s5, %s243
      %s245 = smul.u32 2, %s22
      %p246 = scmp.lt.s32.totalorder %s21, 1
      %s247 = scalar_select %p246, %s21, 1
      %p248 = scmp.lt.s32.totalorder %s245, 1
      %s249 = scalar_select %p248, %s245, 1
      %s250 = smul.addr %s247, 8
      %s251 = sadd.s32 %s249, %s250
      %s252 = smul.addr %s251, 8
      %s253 = scalar_lea.vmem %s0, %s252
      %s254 = smul.u32 2, %s22
      %s255 = smul.u32 2, %s22
      %p256 = scmp.lt.s32.totalorder %s21, 1
      %s257 = scalar_select %p256, %s21, 1
      %p258 = scmp.lt.s32.totalorder %s255, 1
      %s259 = scalar_select %p258, %s255, 1
      %s260 = smul.addr %s257, 8
      %s261 = sadd.s32 %s259, %s260
      %s262 = smul.addr %s261, 8
      %s263 = scalar_lea.vmem %s5, %s262
      %s264 = smul.u32 2, %s22
      %v265 = vld [vmem:[%s1] sm:$0xf]
      %v266 = vld [vmem:[%s2] sm:$0xf]
      %v267 = vld [vmem:[%s3] sm:$0xf]
      %s268 = sld [smem:[#allocation2]]
      %v269 = vld [vmem:[%s253] sm:$0xff]
      %v270 = vld [vmem:[%s253 + $0x8] sm:$0xff]
      %v271 = vld [vmem:[%s253 + $0x10] sm:$0xff]
      %v272 = vld [vmem:[%s253 + $0x18] sm:$0xff]
      %v273 = vld [vmem:[%s253 + $0x20] sm:$0xff]
      %v274 = vld [vmem:[%s253 + $0x28] sm:$0xff]
      %v275 = vld [vmem:[%s253 + $0x30] sm:$0xff]
      %v276 = vld [vmem:[%s253 + $0x38] sm:$0xff]
      %278 = vset.pattern.permute.xlu0 0
      %279 = vperm.xlu0 %278, %v266
      %v280 = vpop.permute.xlu0 %279
      %vm282 = vcmask 261120
      %v284 = vsel %vm282, %v265, 0
      %286 = vmatpush.msra.mxu0 0.0
      %287 = vmatpush.msra.mxu0 0.0
      %288 = vmatpush.msra.mxu0 0.0
      %289 = vmatpush.msra.mxu0 0.0
      %290 = vmatpush.msra.mxu0 0.0
      %291 = vmatpush.msra.mxu0 0.0
      %292 = vmatpush.msra.mxu0 0.0
      %293 = vmatpush.msra.mxu0 0.0
      %294 = vmatpush.msra.mxu0 0.0
      %295 = vmatpush.msra.mxu0 0.0
      %296 = vmatpush.msra.mxu0 0.0
      %297 = vmatpush.msra.mxu0 0.0
      %298 = vmatpush.msra.mxu0 %v275
      %299 = vmatpush.msra.mxu0 %v273
      %300 = vmatpush.msra.mxu0 %v271
      %301 = vmatpush.msra.mxu0 %v269
      %302 = vmatmul.f32.gmra.mxu0 %v284
      %v303 = vpop.f32.mrf.mxu0
      %v304 = vadd.f32 %v280, %v303
      %305 = vdwg.mxu0
      %306 = vmatpush.msra.mxu0 0.0
      %307 = vmatpush.msra.mxu0 0.0
      %308 = vmatpush.msra.mxu0 0.0
      %309 = vmatpush.msra.mxu0 0.0
      %310 = vmatpush.msra.mxu0 0.0
      %311 = vmatpush.msra.mxu0 0.0
      %312 = vmatpush.msra.mxu0 0.0
      %313 = vmatpush.msra.mxu0 0.0
      %314 = vmatpush.msra.mxu0 0.0
      %315 = vmatpush.msra.mxu0 0.0
      %316 = vmatpush.msra.mxu0 0.0
      %317 = vmatpush.msra.mxu0 0.0
      %318 = vmatpush.msra.mxu0 %v276
      %319 = vmatpush.msra.mxu0 %v274
      %320 = vmatpush.msra.mxu0 %v272
      %321 = vmatpush.msra.mxu0 %v270
      %322 = vmatmul.f32.gmra.mxu0 %v284
      %v323 = vpop.f32.mrf.mxu0
      %v324 = vadd.f32 %v280, %v323
      %325 = vdwg.mxu0
      %v326 = vmax.f32 %v304, 0.0
      %v327 = vmax.f32 %v324, 0.0
      %329 = vset.pattern.permute.xlu0 0
      %330 = vperm.xlu0 %329, %v267
      %v331 = vpop.permute.xlu0 %330
      %v333 = vmul.f32 %v326, %v331
      %v334 = vmul.f32 %v327, %v331
      %vm335 = vcmask 1043456
      %v336 = vsel %vm335, %v333, 0.0
      %v337 = vrot.slane %v336, 4
      %v338 = vadd.f32 %v336, %v337
      %v339 = vrot.slane %v338, 2
      %v340 = vadd.f32 %v338, %v339
      %v341 = vrot.slane %v340, 1
      %v342 = vadd.f32 %v340, %v341
      %v343 = vsel %vm335, %v334, 0.0
      %v344 = vrot.slane %v343, 4
      %v345 = vadd.f32 %v343, %v344
      %v346 = vrot.slane %v345, 2
      %v347 = vadd.f32 %v345, %v346
      %v348 = vrot.slane %v347, 1
      %v349 = vadd.f32 %v347, %v348
      %v350 = vstv %s268
      %v351 = vadd.f32 %v342, %v350
      %v352 = vadd.f32 %v349, %v350
      %v353 = vxor.u32 %v351, 2147483648
      %v354 = vxor.u32 %v352, 2147483648
      %v355 = vmul.f32 %v353, 1.442695
      %v356 = vpow.pop %v355
      %v357 = vmul.f32 %v354, 1.442695
      %v358 = vpow.pop %v357
      %v359 = vadd.f32 %v356, 1.0
      %v360 = vadd.f32 %v358, 1.0
      %v361 = vrcp.pop %v359
      %v362 = vmul.f32 %v359, %v361
      %v363 = vsub.f32 1.0, %v362
      %v364 = vmul.f32 %v361, %v363
      %v365 = vadd.f32 %v361, %v364
      %vm366 = vweird.f32 %v359
      %vm367 = vweird.f32 %v361
      %vm368 = vmor %vm366, %vm367
      %v369 = vsel %vm368, %v361, %v365
      %v370 = vand.u32 2147483647, %v359
      %vm371 = vcmp.eq.f32.partialorder %v370, 8.507059e+37
      %v372 = vand.u32 %v359, 2147483648
      %v373 = vor.u32 1.1754944e-38, %v372
      %v374 = vsel %vm371, %v373, %v369
      %v375 = vmul.f32 1.0, %v374
      %v376 = vrcp.pop %v360
      %v377 = vmul.f32 %v360, %v376
      %v378 = vsub.f32 1.0, %v377
      %v379 = vmul.f32 %v376, %v378
      %v380 = vadd.f32 %v376, %v379
      %vm381 = vweird.f32 %v360
      %vm382 = vweird.f32 %v376
      %vm383 = vmor %vm381, %vm382
      %v384 = vsel %vm383, %v376, %v380
      %v385 = vand.u32 2147483647, %v360
      %vm386 = vcmp.eq.f32.partialorder %v385, 8.507059e+37
      %v387 = vand.u32 %v360, 2147483648
      %v388 = vor.u32 1.1754944e-38, %v387
      %v389 = vsel %vm386, %v388, %v384
      %v390 = vmul.f32 1.0, %v389
      %v391 = vmul.f32 %v269, %v375
      %v392 = vmul.f32 %v270, %v390
      %v393 = vmul.f32 %v271, %v375
      %v394 = vmul.f32 %v272, %v390
      %v395 = vmul.f32 %v273, %v375
      %v396 = vmul.f32 %v274, %v390
      %v397 = vmul.f32 %v275, %v375
      %v398 = vmul.f32 %v276, %v390
      %399 = vst [vmem:[%s263] sm:$0xff] %v391
      %400 = vst [vmem:[%s263 + $0x8] sm:$0xff] %v392
      %401 = vst [vmem:[%s263 + $0x10] sm:$0xff] %v393
      %402 = vst [vmem:[%s263 + $0x18] sm:$0xff] %v394
      %403 = vst [vmem:[%s263 + $0x20] sm:$0xff] %v395
      %404 = vst [vmem:[%s263 + $0x28] sm:$0xff] %v396
      %405 = vst [vmem:[%s263 + $0x30] sm:$0xff] %v397
      %406 = vst [vmem:[%s263 + $0x38] sm:$0xff] %v398
      %s407 = smul.u32 2, %s22
      %p408 = scmp.lt.s32.totalorder %s21, 1
      %s409 = scalar_select %p408, %s21, 1
      %p410 = scmp.lt.s32.totalorder %s407, 1
      %s411 = scalar_select %p410, %s407, 1
      %s412 = smul.addr %s409, 8
      %s413 = sadd.s32 %s411, %s412
      %s414 = smul.addr %s413, 8
      %s415 = scalar_lea.vmem %s5, %s414
      // Predicated region
      $region41: #{pa_layer.1} parent=39 // pred_check
        %p416 = pneg %p161
      $region42: #{pa_layer.1} parent=39 // pred_check_branch
        %418 = sbr.rel (%p416) target = $region44
      $region43: #{pa_layer.1} parent=39 // pred_region
        %s419 = smul.u32 2, %s22
      $region44: #{pa_layer.1} parent=39 // pred_fallthru
        _
    $region40: #{pa_layer.1} parent=5 // pred_fallthru
      _
    %p420 = scmp.le.s32.totalorder 2, %s12
    // Predicated region
    $region45: #{pa_layer.1} parent=5 // pred_check
      %p421 = pneg %p420
    $region46: #{pa_layer.1} parent=5 // pred_check_branch
      %423 = sbr.rel (%p421) target = $region48
    $region47: #{pa_layer.1} parent=5 // pred_region
      %s424 = ssub.s32 %s12, 2
      // Predicated region
      $region49: #{pa_layer.1} parent=47 // pred_check
        %p425 = pneg %p167
      $region50: #{pa_layer.1} parent=47 // pred_check_branch
        %427 = sbr.rel (%p425) target = $region52
      $region51: #{pa_layer.1} parent=47 // pred_region
        %s428 = smul.u32 2, %s24
        %p429 = scmp.lt.s32.totalorder %s23, 1
        %s430 = scalar_select %p429, %s23, 1
        %p431 = scmp.lt.s32.totalorder %s428, 1
        %s432 = scalar_select %p431, %s428, 1
        %s433 = smul.addr %s430, 8
        %s434 = sadd.s32 %s432, %s433
        %s435 = smul.addr %s434, 8
        %s436 = scalar_lea.vmem %s5, %s435
      $region52: #{pa_layer.1} parent=47 // pred_fallthru
        _
    $region48: #{pa_layer.1} parent=5 // pred_fallthru
      _
  $region6: #{pa_layer.1} parent=0 // loop_footer
    %s16 = sadd.s32 1, %s12
  $region7: #{pa_layer.1} parent=0 // loop_footer_branch
    %11 = sbr.rel target = $region3
  $region8: #{pa_layer.1} parent=0 // loop_exit
    _

</llo_original>
